<compile_context>
chip_gen: v5e
topology: v5e:2x2
jax: 0.10.0
libtpu: 0.0.40
codegen_flags: <defaults>
</compile_context>

<pallas_src>
import functools
import math

import jax
import jax.numpy as jnp
from jax import lax
from jax.experimental import pallas as pl
from jax.experimental.pallas import tpu as pltpu


def _quad(v):
    if isinstance(v, int):
        return (v,) * 4
    v = tuple(int(t) for t in v)
    if len(v) != 4:
        raise ValueError(f"expected an int or a length-4 tuple, got {v!r}")
    return v


def _max_pool4d_kernel(x_ref, o_ref, *, kernel, stride, out_dims):
    """One (S1,S2,S3,S4,T) slab: separable 4-D window max, written lane-dense.

    Axes 0..2 are untiled leading dims (slices there are pure vreg selection);
    axis 3 sits on sublanes (slices are cheap sublane shifts); axis 4 (the N*C
    chunk) sits on lanes and is never sliced.
    """
    m = x_ref[...]                                           # (S1, S2, S3, S4, T)

    # --- the three leading spatial axes --------------------------------------
    for axis in range(3):
        k, s, L = kernel[axis], stride[axis], out_dims[axis]
        n = m.shape[axis]
        acc = lax.slice_in_dim(m, 0, n - k + 1, axis=axis)
        for j in range(1, k):                                # stride-1 window max (shifts)
            acc = jnp.maximum(acc, lax.slice_in_dim(m, j, j + n - k + 1, axis=axis))
        if s > 1:                                            # subsample to strided outputs
            parts = [lax.slice_in_dim(acc, o * s, o * s + 1, axis=axis) for o in range(L)]
            acc = parts[0] if L == 1 else jnp.concatenate(parts, axis=axis)
        m = acc

    # --- last spatial axis (sublane dim) --------------------------------------
    k4, s4, L4 = kernel[3], stride[3], out_dims[3]
    n4 = m.shape[3]
    acc = lax.slice_in_dim(m, 0, n4 - k4 + 1, axis=3)
    for j in range(1, k4):
        acc = jnp.maximum(acc, lax.slice_in_dim(m, j, j + n4 - k4 + 1, axis=3))
    if s4 == 1:
        o_ref[...] = acc
    else:
        for o in range(L4):
            o_ref[:, :, :, pl.ds(o, 1), :] = lax.slice_in_dim(acc, o * s4, o * s4 + 1, axis=3)


@functools.partial(jax.jit, static_argnums=(1, 2))
def _max_pool4d(x, kernel, strides):
    if x.ndim != 6:
        raise ValueError(f"input should be 6-dimensional (N, C, S1, S2, S3, S4), got {x.ndim}D")
    N, C = int(x.shape[0]), int(x.shape[1])
    spatial = tuple(int(d) for d in x.shape[2:])
    for d, k, s in zip(spatial, kernel, strides):
        if k < 1 or s < 1:
            raise ValueError("kernel_size and stride must be positive")
        if k > d:
            raise ValueError(f"kernel size {kernel} too large for spatial dims {spatial}")
    out_dims = tuple((d - k) // s + 1 for d, k, s in zip(spatial, kernel, strides))

    NC = N * C
    LANE = 128
    itemsize = jnp.dtype(x.dtype).itemsize
    bytes_per_lane_chunk = math.prod(spatial) * LANE * itemsize
    # Lane-chunk (how many multiples of 128 N*C slices per grid step): target ~4 MiB blocks.
    t = max(1, min(-(-NC // LANE), (4 * 1024 * 1024) // max(bytes_per_lane_chunk, 1)))
    T = t * LANE
    NC_pad = -(-NC // T) * T
    # TODO(synk): very large spatial volumes (>~4 MiB per 128 N*C slices) would additionally
    # need halo tiling along the spatial axes; not implemented here.

    # Lane-dense layout: (S1, S2, S3, S4, NC_pad) — batch*channel on lanes, spatial leading.
    x_t = jnp.transpose(x, (2, 3, 4, 5, 0, 1)).reshape(spatial + (NC,))
    if NC_pad != NC:
        x_t = jnp.pad(x_t, ((0, 0),) * 4 + ((0, NC_pad - NC),))

    out_t = pl.pallas_call(
        functools.partial(_max_pool4d_kernel, kernel=kernel, stride=strides, out_dims=out_dims),
        out_shape=jax.ShapeDtypeStruct(out_dims + (NC_pad,), x.dtype),
        grid_spec=pltpu.PrefetchScalarGridSpec(
            num_scalar_prefetch=0,
            grid=(NC_pad // T,),
            in_specs=[pl.BlockSpec(spatial + (T,), lambda i: (0, 0, 0, 0, i))],
            out_specs=pl.BlockSpec(out_dims + (T,), lambda i: (0, 0, 0, 0, i)),
        ),
        compiler_params=pltpu.CompilerParams(
            dimension_semantics=("parallel",),     # megacore-shardable on v7x
            vmem_limit_bytes=32 * 1024 * 1024,
        ),
    )(x_t)

    out = out_t[..., :NC].reshape(out_dims + (N, C))
    return jnp.transpose(out, (4, 5, 0, 1, 2, 3))


def max_pool4d(x, kernel_size, stride=None):
    kernel = _quad(kernel_size)
    strides = kernel if stride is None else _quad(stride)
    return _max_pool4d(x, kernel, strides)


class MaxPool4d:
    """Pallas port of torch4d.MaxPool4d (forward only; argmax indices not produced)."""

    def __init__(self, kernel_size, stride):
        self.kernel_size = _quad(kernel_size)
        self.stride = _quad(stride) if stride is not None else self.kernel_size

    def __call__(self, x):
        return max_pool4d(x, self.kernel_size, self.stride)


def _reference(x, kernel_size, stride):
    """Pure-JAX reference mirroring the torch semantics (lax.reduce_window, VALID)."""
    kernel = _quad(kernel_size)
    strides = _quad(stride)
    return lax.reduce_window(x, -jnp.inf, lax.max,
                             (1, 1) + kernel, (1, 1) + strides, "VALID")


if __name__ == "__main__":
    k1, k2 = jax.random.split(jax.random.PRNGKey(0))

    # Config 1: uniform kernel / stride.
    x = jax.random.normal(k1, (2, 4, 8, 8, 8, 8), dtype=jnp.float32)
    pool = MaxPool4d(kernel_size=3, stride=2)
    out = jax.block_until_ready(pool(x))
    ref = jax.block_until_ready(_reference(x, 3, 2))
    assert out.shape == ref.shape == (2, 4, 3, 3, 3, 3), out.shape
    assert out.dtype == x.dtype
    assert jnp.array_equal(out, ref), "mismatch vs reference (config 1)"

    # Config 2: non-uniform kernel / stride, non-power-of-two spatial dims.
    x2 = jax.random.normal(k2, (1, 3, 5, 6, 8, 8), dtype=jnp.float32)
    pool2 = MaxPool4d(kernel_size=(2, 3, 3, 2), stride=(1, 2, 2, 3))
    out2 = jax.block_until_ready(pool2(x2))
    ref2 = jax.block_until_ready(_reference(x2, (2, 3, 3, 2), (1, 2, 2, 3)))
    assert out2.shape == ref2.shape == (1, 3, 4, 2, 3, 3), out2.shape
    assert jnp.array_equal(out2, ref2), "mismatch vs reference (config 2)"

    print("KERNEL_OK")
</pallas_src>

<mosaic_0001>
module attributes {stable_mosaic.version = 11 : i64} {
  func.func @_max_pool4d_kernel(%arg0: i32, %arg1: memref<8x8x8x8x128xf32, #tpu.memory_space<vmem>>, %arg2: memref<3x3x3x3x128xf32, #tpu.memory_space<vmem>>) attributes {dimension_semantics = [#tpu.dimension_semantics<parallel>], iteration_bounds = array<i64: 1>, scalar_prefetch = 0 : i64, scratch_operands = 0 : i64, tpu.core_type = #tpu.core_type<tc>, window_params = [{transform_indices = @transform_0, window_bounds = array<i64: 8, 8, 8, 8, 128>}, {transform_indices = @transform_1, window_bounds = array<i64: 3, 3, 3, 3, 128>}]} {
    %c0 = arith.constant 0 : index
    %c0_0 = arith.constant 0 : index
    %c0_1 = arith.constant 0 : index
    %c0_2 = arith.constant 0 : index
    %c0_3 = arith.constant 0 : index
    %0 = vector.load %arg1[%c0, %c0_0, %c0_1, %c0_2, %c0_3] : memref<8x8x8x8x128xf32, #tpu.memory_space<vmem>>, vector<8x8x8x8x128xf32>
    %1 = vector.extract_strided_slice %0 {offsets = [0, 0, 0, 0, 0], sizes = [6, 8, 8, 8, 128], strides = [1, 1, 1, 1, 1]} : vector<8x8x8x8x128xf32> to vector<6x8x8x8x128xf32>
    %2 = vector.extract_strided_slice %0 {offsets = [1, 0, 0, 0, 0], sizes = [6, 8, 8, 8, 128], strides = [1, 1, 1, 1, 1]} : vector<8x8x8x8x128xf32> to vector<6x8x8x8x128xf32>
    %3 = arith.maximumf %1, %2 : vector<6x8x8x8x128xf32>
    %4 = vector.extract_strided_slice %0 {offsets = [2, 0, 0, 0, 0], sizes = [6, 8, 8, 8, 128], strides = [1, 1, 1, 1, 1]} : vector<8x8x8x8x128xf32> to vector<6x8x8x8x128xf32>
    %5 = arith.maximumf %3, %4 : vector<6x8x8x8x128xf32>
    %6 = vector.extract_strided_slice %5 {offsets = [0, 0, 0, 0, 0], sizes = [1, 8, 8, 8, 128], strides = [1, 1, 1, 1, 1]} : vector<6x8x8x8x128xf32> to vector<1x8x8x8x128xf32>
    %7 = vector.extract_strided_slice %5 {offsets = [2, 0, 0, 0, 0], sizes = [1, 8, 8, 8, 128], strides = [1, 1, 1, 1, 1]} : vector<6x8x8x8x128xf32> to vector<1x8x8x8x128xf32>
    %8 = vector.extract_strided_slice %5 {offsets = [4, 0, 0, 0, 0], sizes = [1, 8, 8, 8, 128], strides = [1, 1, 1, 1, 1]} : vector<6x8x8x8x128xf32> to vector<1x8x8x8x128xf32>
    %9 = tpu.concatenate %6, %7, %8 in 0 : vector<1x8x8x8x128xf32>, vector<1x8x8x8x128xf32>, vector<1x8x8x8x128xf32> -> vector<3x8x8x8x128xf32>
    %10 = vector.extract_strided_slice %9 {offsets = [0, 0, 0, 0, 0], sizes = [3, 6, 8, 8, 128], strides = [1, 1, 1, 1, 1]} : vector<3x8x8x8x128xf32> to vector<3x6x8x8x128xf32>
    %11 = vector.extract_strided_slice %9 {offsets = [0, 1, 0, 0, 0], sizes = [3, 6, 8, 8, 128], strides = [1, 1, 1, 1, 1]} : vector<3x8x8x8x128xf32> to vector<3x6x8x8x128xf32>
    %12 = arith.maximumf %10, %11 : vector<3x6x8x8x128xf32>
    %13 = vector.extract_strided_slice %9 {offsets = [0, 2, 0, 0, 0], sizes = [3, 6, 8, 8, 128], strides = [1, 1, 1, 1, 1]} : vector<3x8x8x8x128xf32> to vector<3x6x8x8x128xf32>
    %14 = arith.maximumf %12, %13 : vector<3x6x8x8x128xf32>
    %15 = vector.extract_strided_slice %14 {offsets = [0, 0, 0, 0, 0], sizes = [3, 1, 8, 8, 128], strides = [1, 1, 1, 1, 1]} : vector<3x6x8x8x128xf32> to vector<3x1x8x8x128xf32>
    %16 = vector.extract_strided_slice %14 {offsets = [0, 2, 0, 0, 0], sizes = [3, 1, 8, 8, 128], strides = [1, 1, 1, 1, 1]} : vector<3x6x8x8x128xf32> to vector<3x1x8x8x128xf32>
    %17 = vector.extract_strided_slice %14 {offsets = [0, 4, 0, 0, 0], sizes = [3, 1, 8, 8, 128], strides = [1, 1, 1, 1, 1]} : vector<3x6x8x8x128xf32> to vector<3x1x8x8x128xf32>
    %18 = tpu.concatenate %15, %16, %17 in 1 : vector<3x1x8x8x128xf32>, vector<3x1x8x8x128xf32>, vector<3x1x8x8x128xf32> -> vector<3x3x8x8x128xf32>
    %19 = vector.extract_strided_slice %18 {offsets = [0, 0, 0, 0, 0], sizes = [3, 3, 6, 8, 128], strides = [1, 1, 1, 1, 1]} : vector<3x3x8x8x128xf32> to vector<3x3x6x8x128xf32>
    %20 = vector.extract_strided_slice %18 {offsets = [0, 0, 1, 0, 0], sizes = [3, 3, 6, 8, 128], strides = [1, 1, 1, 1, 1]} : vector<3x3x8x8x128xf32> to vector<3x3x6x8x128xf32>
    %21 = arith.maximumf %19, %20 : vector<3x3x6x8x128xf32>
    %22 = vector.extract_strided_slice %18 {offsets = [0, 0, 2, 0, 0], sizes = [3, 3, 6, 8, 128], strides = [1, 1, 1, 1, 1]} : vector<3x3x8x8x128xf32> to vector<3x3x6x8x128xf32>
    %23 = arith.maximumf %21, %22 : vector<3x3x6x8x128xf32>
    %24 = vector.extract_strided_slice %23 {offsets = [0, 0, 0, 0, 0], sizes = [3, 3, 1, 8, 128], strides = [1, 1, 1, 1, 1]} : vector<3x3x6x8x128xf32> to vector<3x3x1x8x128xf32>
    %25 = vector.extract_strided_slice %23 {offsets = [0, 0, 2, 0, 0], sizes = [3, 3, 1, 8, 128], strides = [1, 1, 1, 1, 1]} : vector<3x3x6x8x128xf32> to vector<3x3x1x8x128xf32>
    %26 = vector.extract_strided_slice %23 {offsets = [0, 0, 4, 0, 0], sizes = [3, 3, 1, 8, 128], strides = [1, 1, 1, 1, 1]} : vector<3x3x6x8x128xf32> to vector<3x3x1x8x128xf32>
    %27 = tpu.concatenate %24, %25, %26 in 2 : vector<3x3x1x8x128xf32>, vector<3x3x1x8x128xf32>, vector<3x3x1x8x128xf32> -> vector<3x3x3x8x128xf32>
    %28 = vector.extract_strided_slice %27 {offsets = [0, 0, 0, 0, 0], sizes = [3, 3, 3, 6, 128], strides = [1, 1, 1, 1, 1]} : vector<3x3x3x8x128xf32> to vector<3x3x3x6x128xf32>
    %29 = vector.extract_strided_slice %27 {offsets = [0, 0, 0, 1, 0], sizes = [3, 3, 3, 6, 128], strides = [1, 1, 1, 1, 1]} : vector<3x3x3x8x128xf32> to vector<3x3x3x6x128xf32>
    %30 = arith.maximumf %28, %29 : vector<3x3x3x6x128xf32>
    %31 = vector.extract_strided_slice %27 {offsets = [0, 0, 0, 2, 0], sizes = [3, 3, 3, 6, 128], strides = [1, 1, 1, 1, 1]} : vector<3x3x3x8x128xf32> to vector<3x3x3x6x128xf32>
    %32 = arith.maximumf %30, %31 : vector<3x3x3x6x128xf32>
    %33 = vector.extract_strided_slice %32 {offsets = [0, 0, 0, 0, 0], sizes = [3, 3, 3, 1, 128], strides = [1, 1, 1, 1, 1]} : vector<3x3x3x6x128xf32> to vector<3x3x3x1x128xf32>
    %c0_4 = arith.constant 0 : index
    %c0_5 = arith.constant 0 : index
    %c0_6 = arith.constant 0 : index
    %c0_7 = arith.constant 0 : index
    %c0_8 = arith.constant 0 : index
    %34 = vector.load %arg2[%c0_4, %c0_5, %c0_6, %c0_7, %c0_8] : memref<3x3x3x3x128xf32, #tpu.memory_space<vmem>>, vector<3x3x3x1x128xf32>
    tpu.vector_store %arg2[%c0_4, %c0_5, %c0_6, %c0_7, %c0_8], %33 {strides = array<i32>} : memref<3x3x3x3x128xf32, #tpu.memory_space<vmem>>, vector<3x3x3x1x128xf32>,
    %35 = vector.extract_strided_slice %32 {offsets = [0, 0, 0, 2, 0], sizes = [3, 3, 3, 1, 128], strides = [1, 1, 1, 1, 1]} : vector<3x3x3x6x128xf32> to vector<3x3x3x1x128xf32>
    %c0_9 = arith.constant 0 : index
    %c0_10 = arith.constant 0 : index
    %c0_11 = arith.constant 0 : index
    %c1 = arith.constant 1 : index
    %c0_12 = arith.constant 0 : index
    %36 = vector.load %arg2[%c0_9, %c0_10, %c0_11, %c1, %c0_12] : memref<3x3x3x3x128xf32, #tpu.memory_space<vmem>>, vector<3x3x3x1x128xf32>
    tpu.vector_store %arg2[%c0_9, %c0_10, %c0_11, %c1, %c0_12], %35 {strides = array<i32>} : memref<3x3x3x3x128xf32, #tpu.memory_space<vmem>>, vector<3x3x3x1x128xf32>,
    %37 = vector.extract_strided_slice %32 {offsets = [0, 0, 0, 4, 0], sizes = [3, 3, 3, 1, 128], strides = [1, 1, 1, 1, 1]} : vector<3x3x3x6x128xf32> to vector<3x3x3x1x128xf32>
    %c0_13 = arith.constant 0 : index
    %c0_14 = arith.constant 0 : index
    %c0_15 = arith.constant 0 : index
    %c2 = arith.constant 2 : index
    %c0_16 = arith.constant 0 : index
    %38 = vector.load %arg2[%c0_13, %c0_14, %c0_15, %c2, %c0_16] : memref<3x3x3x3x128xf32, #tpu.memory_space<vmem>>, vector<3x3x3x1x128xf32>
    tpu.vector_store %arg2[%c0_13, %c0_14, %c0_15, %c2, %c0_16], %37 {strides = array<i32>} : memref<3x3x3x3x128xf32, #tpu.memory_space<vmem>>, vector<3x3x3x1x128xf32>,
    return
  }
  func.func @transform_0(%arg0: i32) -> (i32, i32, i32, i32, i32) {
    %c0_i32 = arith.constant 0 : i32
    %c0_i32_0 = arith.constant 0 : i32
    %c0_i32_1 = arith.constant 0 : i32
    %c0_i32_2 = arith.constant 0 : i32
    %c0_i32_3 = arith.constant 0 : i32
    return %c0_i32, %c0_i32_0, %c0_i32_1, %c0_i32_2, %arg0 : i32, i32, i32, i32, i32
  }
  func.func @transform_1(%arg0: i32) -> (i32, i32, i32, i32, i32) {
    %c0_i32 = arith.constant 0 : i32
    %c0_i32_0 = arith.constant 0 : i32
    %c0_i32_1 = arith.constant 0 : i32
    %c0_i32_2 = arith.constant 0 : i32
    %c0_i32_3 = arith.constant 0 : i32
    return %c0_i32, %c0_i32_0, %c0_i32_1, %c0_i32_2, %arg0 : i32, i32, i32, i32, i32
  }
}

</mosaic_0001>

<llo_original>
// kernel: _max_pool4d.1
$region0: #{_max_pool4d.1}
  #allocation0 [shape = 'u32[]', space=smem, size = 0x4, offset = 0x4, fixed_abs, tag = 'smem constant byte address 0x4 - core index']
  #allocation1 [shape = 'u32[72,128]{1,0:T(1,128)}', space=vmem, size = 0x9000, scoped, tag = 'internal scratch']
  %s0 = inlined_call_operand.vmem [shape: f32[8,8,8,8,128], index: 0, kind: input, shape index: {}]
  %s1 = inlined_call_operand.vmem [shape: f32[3,3,3,3,128], index: 1, kind: output, shape index: {}]
  %s2 = sld [smem:[#allocation0]]
  $region14: #{_max_pool4d.1} parent=0
    _
  %s4 = ssub.s32 1, %s2
  %s5 = scalar_select 0, %s4, %s2
  // Predicated region
  $region2: #{_max_pool4d.1} parent=0 // pred_check
    _
  $region3: #{_max_pool4d.1} parent=0 // pred_check_branch
    %7 = sbr.rel (0) target = $region5
  $region4: #{_max_pool4d.1} parent=0 // pred_region
    _
  $region5: #{_max_pool4d.1} parent=0 // pred_fallthru
    _
  %v8 = vld [vmem:[%s0] sm:$0xff]
  %v9 = vld [vmem:[%s0 + $0x8] sm:$0xff]
  %v10 = vld [vmem:[%s0 + $0x10] sm:$0xff]
  %v11 = vld [vmem:[%s0 + $0x18] sm:$0xff]
  %v12 = vld [vmem:[%s0 + $0x20] sm:$0xff]
  %v13 = vld [vmem:[%s0 + $0x28] sm:$0xff]
  %v14 = vld [vmem:[%s0 + $0x30] sm:$0xff]
  %v15 = vld [vmem:[%s0 + $0x40] sm:$0xff]
  %v16 = vld [vmem:[%s0 + $0x48] sm:$0xff]
  %v17 = vld [vmem:[%s0 + $0x50] sm:$0xff]
  %v18 = vld [vmem:[%s0 + $0x58] sm:$0xff]
  %v19 = vld [vmem:[%s0 + $0x60] sm:$0xff]
  %v20 = vld [vmem:[%s0 + $0x68] sm:$0xff]
  %v21 = vld [vmem:[%s0 + $0x70] sm:$0xff]
  %v22 = vld [vmem:[%s0 + $0x80] sm:$0xff]
  %v23 = vld [vmem:[%s0 + $0x88] sm:$0xff]
  %v24 = vld [vmem:[%s0 + $0x90] sm:$0xff]
  %v25 = vld [vmem:[%s0 + $0x98] sm:$0xff]
  %v26 = vld [vmem:[%s0 + $0xa0] sm:$0xff]
  %v27 = vld [vmem:[%s0 + $0xa8] sm:$0xff]
  %v28 = vld [vmem:[%s0 + $0xb0] sm:$0xff]
  %v29 = vld [vmem:[%s0 + $0xc0] sm:$0xff]
  %v30 = vld [vmem:[%s0 + $0xc8] sm:$0xff]
  %v31 = vld [vmem:[%s0 + $0xd0] sm:$0xff]
  %v32 = vld [vmem:[%s0 + $0xd8] sm:$0xff]
  %v33 = vld [vmem:[%s0 + $0xe0] sm:$0xff]
  %v34 = vld [vmem:[%s0 + $0xe8] sm:$0xff]
  %v35 = vld [vmem:[%s0 + $0xf0] sm:$0xff]
  %v36 = vld [vmem:[%s0 + $0x100] sm:$0xff]
  %v37 = vld [vmem:[%s0 + $0x108] sm:$0xff]
  %v38 = vld [vmem:[%s0 + $0x110] sm:$0xff]
  %v39 = vld [vmem:[%s0 + $0x118] sm:$0xff]
  %v40 = vld [vmem:[%s0 + $0x120] sm:$0xff]
  %v41 = vld [vmem:[%s0 + $0x128] sm:$0xff]
  %v42 = vld [vmem:[%s0 + $0x130] sm:$0xff]
  %v43 = vld [vmem:[%s0 + $0x140] sm:$0xff]
  %v44 = vld [vmem:[%s0 + $0x148] sm:$0xff]
  %v45 = vld [vmem:[%s0 + $0x150] sm:$0xff]
  %v46 = vld [vmem:[%s0 + $0x158] sm:$0xff]
  %v47 = vld [vmem:[%s0 + $0x160] sm:$0xff]
  %v48 = vld [vmem:[%s0 + $0x168] sm:$0xff]
  %v49 = vld [vmem:[%s0 + $0x170] sm:$0xff]
  %v50 = vld [vmem:[%s0 + $0x180] sm:$0xff]
  %v51 = vld [vmem:[%s0 + $0x188] sm:$0xff]
  %v52 = vld [vmem:[%s0 + $0x190] sm:$0xff]
  %v53 = vld [vmem:[%s0 + $0x198] sm:$0xff]
  %v54 = vld [vmem:[%s0 + $0x1a0] sm:$0xff]
  %v55 = vld [vmem:[%s0 + $0x1a8] sm:$0xff]
  %v56 = vld [vmem:[%s0 + $0x1b0] sm:$0xff]
  %v57 = vld [vmem:[%s0 + $0x200] sm:$0xff]
  %v58 = vld [vmem:[%s0 + $0x208] sm:$0xff]
  %v59 = vld [vmem:[%s0 + $0x210] sm:$0xff]
  %v60 = vld [vmem:[%s0 + $0x218] sm:$0xff]
  %v61 = vld [vmem:[%s0 + $0x220] sm:$0xff]
  %v62 = vld [vmem:[%s0 + $0x228] sm:$0xff]
  %v63 = vld [vmem:[%s0 + $0x230] sm:$0xff]
  %v64 = vld [vmem:[%s0 + $0x240] sm:$0xff]
  %v65 = vld [vmem:[%s0 + $0x248] sm:$0xff]
  %v66 = vld [vmem:[%s0 + $0x250] sm:$0xff]
  %v67 = vld [vmem:[%s0 + $0x258] sm:$0xff]
  %v68 = vld [vmem:[%s0 + $0x260] sm:$0xff]
  %v69 = vld [vmem:[%s0 + $0x268] sm:$0xff]
  %v70 = vld [vmem:[%s0 + $0x270] sm:$0xff]
  %v71 = vld [vmem:[%s0 + $0x280] sm:$0xff]
  %v72 = vld [vmem:[%s0 + $0x288] sm:$0xff]
  %v73 = vld [vmem:[%s0 + $0x290] sm:$0xff]
  %v74 = vld [vmem:[%s0 + $0x298] sm:$0xff]
  %v75 = vld [vmem:[%s0 + $0x2a0] sm:$0xff]
  %v76 = vld [vmem:[%s0 + $0x2a8] sm:$0xff]
  %v77 = vld [vmem:[%s0 + $0x2b0] sm:$0xff]
  %v78 = vld [vmem:[%s0 + $0x2c0] sm:$0xff]
  %v79 = vld [vmem:[%s0 + $0x2c8] sm:$0xff]
  %v80 = vld [vmem:[%s0 + $0x2d0] sm:$0xff]
  %v81 = vld [vmem:[%s0 + $0x2d8] sm:$0xff]
  %v82 = vld [vmem:[%s0 + $0x2e0] sm:$0xff]
  %v83 = vld [vmem:[%s0 + $0x2e8] sm:$0xff]
  %v84 = vld [vmem:[%s0 + $0x2f0] sm:$0xff]
  %v85 = vld [vmem:[%s0 + $0x300] sm:$0xff]
  %v86 = vld [vmem:[%s0 + $0x308] sm:$0xff]
  %v87 = vld [vmem:[%s0 + $0x310] sm:$0xff]
  %v88 = vld [vmem:[%s0 + $0x318] sm:$0xff]
  %v89 = vld [vmem:[%s0 + $0x320] sm:$0xff]
  %v90 = vld [vmem:[%s0 + $0x328] sm:$0xff]
  %v91 = vld [vmem:[%s0 + $0x330] sm:$0xff]
  %v92 = vld [vmem:[%s0 + $0x340] sm:$0xff]
  %v93 = vld [vmem:[%s0 + $0x348] sm:$0xff]
  %v94 = vld [vmem:[%s0 + $0x350] sm:$0xff]
  %v95 = vld [vmem:[%s0 + $0x358] sm:$0xff]
  %v96 = vld [vmem:[%s0 + $0x360] sm:$0xff]
  %v97 = vld [vmem:[%s0 + $0x368] sm:$0xff]
  %v98 = vld [vmem:[%s0 + $0x370] sm:$0xff]
  %v99 = vld [vmem:[%s0 + $0x380] sm:$0xff]
  %v100 = vld [vmem:[%s0 + $0x388] sm:$0xff]
  %v101 = vld [vmem:[%s0 + $0x390] sm:$0xff]
  %v102 = vld [vmem:[%s0 + $0x398] sm:$0xff]
  %v103 = vld [vmem:[%s0 + $0x3a0] sm:$0xff]
  %v104 = vld [vmem:[%s0 + $0x3a8] sm:$0xff]
  %v105 = vld [vmem:[%s0 + $0x3b0] sm:$0xff]
  %v106 = vld [vmem:[%s0 + $0x400] sm:$0xff]
  %v107 = vld [vmem:[%s0 + $0x408] sm:$0xff]
  %v108 = vld [vmem:[%s0 + $0x410] sm:$0xff]
  %v109 = vld [vmem:[%s0 + $0x418] sm:$0xff]
  %v110 = vld [vmem:[%s0 + $0x420] sm:$0xff]
  %v111 = vld [vmem:[%s0 + $0x428] sm:$0xff]
  %v112 = vld [vmem:[%s0 + $0x430] sm:$0xff]
  %v113 = vld [vmem:[%s0 + $0x440] sm:$0xff]
  %v114 = vld [vmem:[%s0 + $0x448] sm:$0xff]
  %v115 = vld [vmem:[%s0 + $0x450] sm:$0xff]
  %v116 = vld [vmem:[%s0 + $0x458] sm:$0xff]
  %v117 = vld [vmem:[%s0 + $0x460] sm:$0xff]
  %v118 = vld [vmem:[%s0 + $0x468] sm:$0xff]
  %v119 = vld [vmem:[%s0 + $0x470] sm:$0xff]
  %v120 = vld [vmem:[%s0 + $0x480] sm:$0xff]
  %v121 = vld [vmem:[%s0 + $0x488] sm:$0xff]
  %v122 = vld [vmem:[%s0 + $0x490] sm:$0xff]
  %v123 = vld [vmem:[%s0 + $0x498] sm:$0xff]
  %v124 = vld [vmem:[%s0 + $0x4a0] sm:$0xff]
  %v125 = vld [vmem:[%s0 + $0x4a8] sm:$0xff]
  %v126 = vld [vmem:[%s0 + $0x4b0] sm:$0xff]
  %v127 = vld [vmem:[%s0 + $0x4c0] sm:$0xff]
  %v128 = vld [vmem:[%s0 + $0x4c8] sm:$0xff]
  %v129 = vld [vmem:[%s0 + $0x4d0] sm:$0xff]
  %v130 = vld [vmem:[%s0 + $0x4d8] sm:$0xff]
  %v131 = vld [vmem:[%s0 + $0x4e0] sm:$0xff]
  %v132 = vld [vmem:[%s0 + $0x4e8] sm:$0xff]
  %v133 = vld [vmem:[%s0 + $0x4f0] sm:$0xff]
  %v134 = vld [vmem:[%s0 + $0x500] sm:$0xff]
  %v135 = vld [vmem:[%s0 + $0x508] sm:$0xff]
  %v136 = vld [vmem:[%s0 + $0x510] sm:$0xff]
  %v137 = vld [vmem:[%s0 + $0x518] sm:$0xff]
  %v138 = vld [vmem:[%s0 + $0x520] sm:$0xff]
  %v139 = vld [vmem:[%s0 + $0x528] sm:$0xff]
  %v140 = vld [vmem:[%s0 + $0x530] sm:$0xff]
  %v141 = vld [vmem:[%s0 + $0x540] sm:$0xff]
  %v142 = vld [vmem:[%s0 + $0x548] sm:$0xff]
  %v143 = vld [vmem:[%s0 + $0x550] sm:$0xff]
  %v144 = vld [vmem:[%s0 + $0x558] sm:$0xff]
  %v145 = vld [vmem:[%s0 + $0x560] sm:$0xff]
  %v146 = vld [vmem:[%s0 + $0x568] sm:$0xff]
  %v147 = vld [vmem:[%s0 + $0x570] sm:$0xff]
  %v148 = vld [vmem:[%s0 + $0x580] sm:$0xff]
  %v149 = vld [vmem:[%s0 + $0x588] sm:$0xff]
  %v150 = vld [vmem:[%s0 + $0x590] sm:$0xff]
  %v151 = vld [vmem:[%s0 + $0x598] sm:$0xff]
  %v152 = vld [vmem:[%s0 + $0x5a0] sm:$0xff]
  %v153 = vld [vmem:[%s0 + $0x5a8] sm:$0xff]
  %v154 = vld [vmem:[%s0 + $0x5b0] sm:$0xff]
  %v155 = vld [vmem:[%s0 + $0x600] sm:$0xff]
  %v156 = vld [vmem:[%s0 + $0x608] sm:$0xff]
  %v157 = vld [vmem:[%s0 + $0x610] sm:$0xff]
  %v158 = vld [vmem:[%s0 + $0x618] sm:$0xff]
  %v159 = vld [vmem:[%s0 + $0x620] sm:$0xff]
  %v160 = vld [vmem:[%s0 + $0x628] sm:$0xff]
  %v161 = vld [vmem:[%s0 + $0x630] sm:$0xff]
  %v162 = vld [vmem:[%s0 + $0x640] sm:$0xff]
  %v163 = vld [vmem:[%s0 + $0x648] sm:$0xff]
  %v164 = vld [vmem:[%s0 + $0x650] sm:$0xff]
  %v165 = vld [vmem:[%s0 + $0x658] sm:$0xff]
  %v166 = vld [vmem:[%s0 + $0x660] sm:$0xff]
  %v167 = vld [vmem:[%s0 + $0x668] sm:$0xff]
  %v168 = vld [vmem:[%s0 + $0x670] sm:$0xff]
  %v169 = vld [vmem:[%s0 + $0x680] sm:$0xff]
  %v170 = vld [vmem:[%s0 + $0x688] sm:$0xff]
  %v171 = vld [vmem:[%s0 + $0x690] sm:$0xff]
  %v172 = vld [vmem:[%s0 + $0x698] sm:$0xff]
  %v173 = vld [vmem:[%s0 + $0x6a0] sm:$0xff]
  %v174 = vld [vmem:[%s0 + $0x6a8] sm:$0xff]
  %v175 = vld [vmem:[%s0 + $0x6b0] sm:$0xff]
  %v176 = vld [vmem:[%s0 + $0x6c0] sm:$0xff]
  %v177 = vld [vmem:[%s0 + $0x6c8] sm:$0xff]
  %v178 = vld [vmem:[%s0 + $0x6d0] sm:$0xff]
  %v179 = vld [vmem:[%s0 + $0x6d8] sm:$0xff]
  %v180 = vld [vmem:[%s0 + $0x6e0] sm:$0xff]
  %v181 = vld [vmem:[%s0 + $0x6e8] sm:$0xff]
  %v182 = vld [vmem:[%s0 + $0x6f0] sm:$0xff]
  %v183 = vld [vmem:[%s0 + $0x700] sm:$0xff]
  %v184 = vld [vmem:[%s0 + $0x708] sm:$0xff]
  %v185 = vld [vmem:[%s0 + $0x710] sm:$0xff]
  %v186 = vld [vmem:[%s0 + $0x718] sm:$0xff]
  %v187 = vld [vmem:[%s0 + $0x720] sm:$0xff]
  %v188 = vld [vmem:[%s0 + $0x728] sm:$0xff]
  %v189 = vld [vmem:[%s0 + $0x730] sm:$0xff]
  %v190 = vld [vmem:[%s0 + $0x740] sm:$0xff]
  %v191 = vld [vmem:[%s0 + $0x748] sm:$0xff]
  %v192 = vld [vmem:[%s0 + $0x750] sm:$0xff]
  %v193 = vld [vmem:[%s0 + $0x758] sm:$0xff]
  %v194 = vld [vmem:[%s0 + $0x760] sm:$0xff]
  %v195 = vld [vmem:[%s0 + $0x768] sm:$0xff]
  %v196 = vld [vmem:[%s0 + $0x770] sm:$0xff]
  %v197 = vld [vmem:[%s0 + $0x780] sm:$0xff]
  %v198 = vld [vmem:[%s0 + $0x788] sm:$0xff]
  %v199 = vld [vmem:[%s0 + $0x790] sm:$0xff]
  %v200 = vld [vmem:[%s0 + $0x798] sm:$0xff]
  %v201 = vld [vmem:[%s0 + $0x7a0] sm:$0xff]
  %v202 = vld [vmem:[%s0 + $0x7a8] sm:$0xff]
  %v203 = vld [vmem:[%s0 + $0x7b0] sm:$0xff]
  %v204 = vld [vmem:[%s0 + $0x800] sm:$0xff]
  %v205 = vld [vmem:[%s0 + $0x808] sm:$0xff]
  %v206 = vld [vmem:[%s0 + $0x810] sm:$0xff]
  %v207 = vld [vmem:[%s0 + $0x818] sm:$0xff]
  %v208 = vld [vmem:[%s0 + $0x820] sm:$0xff]
  %v209 = vld [vmem:[%s0 + $0x828] sm:$0xff]
  %v210 = vld [vmem:[%s0 + $0x830] sm:$0xff]
  %v211 = vld [vmem:[%s0 + $0x840] sm:$0xff]
  %v212 = vld [vmem:[%s0 + $0x848] sm:$0xff]
  %v213 = vld [vmem:[%s0 + $0x850] sm:$0xff]
  %v214 = vld [vmem:[%s0 + $0x858] sm:$0xff]
  %v215 = vld [vmem:[%s0 + $0x860] sm:$0xff]
  %v216 = vld [vmem:[%s0 + $0x868] sm:$0xff]
  %v217 = vld [vmem:[%s0 + $0x870] sm:$0xff]
  %v218 = vld [vmem:[%s0 + $0x880] sm:$0xff]
  %v219 = vld [vmem:[%s0 + $0x888] sm:$0xff]
  %v220 = vld [vmem:[%s0 + $0x890] sm:$0xff]
  %v221 = vld [vmem:[%s0 + $0x898] sm:$0xff]
  %v222 = vld [vmem:[%s0 + $0x8a0] sm:$0xff]
  %v223 = vld [vmem:[%s0 + $0x8a8] sm:$0xff]
  %v224 = vld [vmem:[%s0 + $0x8b0] sm:$0xff]
  %v225 = vld [vmem:[%s0 + $0x8c0] sm:$0xff]
  %v226 = vld [vmem:[%s0 + $0x8c8] sm:$0xff]
  %v227 = vld [vmem:[%s0 + $0x8d0] sm:$0xff]
  %v228 = vld [vmem:[%s0 + $0x8d8] sm:$0xff]
  %v229 = vld [vmem:[%s0 + $0x8e0] sm:$0xff]
  %v230 = vld [vmem:[%s0 + $0x8e8] sm:$0xff]
  %v231 = vld [vmem:[%s0 + $0x8f0] sm:$0xff]
  %v232 = vld [vmem:[%s0 + $0x900] sm:$0xff]
  %v233 = vld [vmem:[%s0 + $0x908] sm:$0xff]
  %v234 = vld [vmem:[%s0 + $0x910] sm:$0xff]
  %v235 = vld [vmem:[%s0 + $0x918] sm:$0xff]
  %v236 = vld [vmem:[%s0 + $0x920] sm:$0xff]
  %v237 = vld [vmem:[%s0 + $0x928] sm:$0xff]
  %v238 = vld [vmem:[%s0 + $0x930] sm:$0xff]
  %v239 = vld [vmem:[%s0 + $0x940] sm:$0xff]
  %v240 = vld [vmem:[%s0 + $0x948] sm:$0xff]
  %v241 = vld [vmem:[%s0 + $0x950] sm:$0xff]
  %v242 = vld [vmem:[%s0 + $0x958] sm:$0xff]
  %v243 = vld [vmem:[%s0 + $0x960] sm:$0xff]
  %v244 = vld [vmem:[%s0 + $0x968] sm:$0xff]
  %v245 = vld [vmem:[%s0 + $0x970] sm:$0xff]
  %v246 = vld [vmem:[%s0 + $0x980] sm:$0xff]
  %v247 = vld [vmem:[%s0 + $0x988] sm:$0xff]
  %v248 = vld [vmem:[%s0 + $0x990] sm:$0xff]
  %v249 = vld [vmem:[%s0 + $0x998] sm:$0xff]
  %v250 = vld [vmem:[%s0 + $0x9a0] sm:$0xff]
  %v251 = vld [vmem:[%s0 + $0x9a8] sm:$0xff]
  %v252 = vld [vmem:[%s0 + $0x9b0] sm:$0xff]
  %v253 = vld [vmem:[%s0 + $0xa00] sm:$0xff]
  %v254 = vld [vmem:[%s0 + $0xa08] sm:$0xff]
  %v255 = vld [vmem:[%s0 + $0xa10] sm:$0xff]
  %v256 = vld [vmem:[%s0 + $0xa18] sm:$0xff]
  %v257 = vld [vmem:[%s0 + $0xa20] sm:$0xff]
  %v258 = vld [vmem:[%s0 + $0xa28] sm:$0xff]
  %v259 = vld [vmem:[%s0 + $0xa30] sm:$0xff]
  %v260 = vld [vmem:[%s0 + $0xa40] sm:$0xff]
  %v261 = vld [vmem:[%s0 + $0xa48] sm:$0xff]
  %v262 = vld [vmem:[%s0 + $0xa50] sm:$0xff]
  %v263 = vld [vmem:[%s0 + $0xa58] sm:$0xff]
  %v264 = vld [vmem:[%s0 + $0xa60] sm:$0xff]
  %v265 = vld [vmem:[%s0 + $0xa68] sm:$0xff]
  %v266 = vld [vmem:[%s0 + $0xa70] sm:$0xff]
  %v267 = vld [vmem:[%s0 + $0xa80] sm:$0xff]
  %v268 = vld [vmem:[%s0 + $0xa88] sm:$0xff]
  %v269 = vld [vmem:[%s0 + $0xa90] sm:$0xff]
  %v270 = vld [vmem:[%s0 + $0xa98] sm:$0xff]
  %v271 = vld [vmem:[%s0 + $0xaa0] sm:$0xff]
  %v272 = vld [vmem:[%s0 + $0xaa8] sm:$0xff]
  %v273 = vld [vmem:[%s0 + $0xab0] sm:$0xff]
  %v274 = vld [vmem:[%s0 + $0xac0] sm:$0xff]
  %v275 = vld [vmem:[%s0 + $0xac8] sm:$0xff]
  %v276 = vld [vmem:[%s0 + $0xad0] sm:$0xff]
  %v277 = vld [vmem:[%s0 + $0xad8] sm:$0xff]
  %v278 = vld [vmem:[%s0 + $0xae0] sm:$0xff]
  %v279 = vld [vmem:[%s0 + $0xae8] sm:$0xff]
  %v280 = vld [vmem:[%s0 + $0xaf0] sm:$0xff]
  %v281 = vld [vmem:[%s0 + $0xb00] sm:$0xff]
  %v282 = vld [vmem:[%s0 + $0xb08] sm:$0xff]
  %v283 = vld [vmem:[%s0 + $0xb10] sm:$0xff]
  %v284 = vld [vmem:[%s0 + $0xb18] sm:$0xff]
  %v285 = vld [vmem:[%s0 + $0xb20] sm:$0xff]
  %v286 = vld [vmem:[%s0 + $0xb28] sm:$0xff]
  %v287 = vld [vmem:[%s0 + $0xb30] sm:$0xff]
  %v288 = vld [vmem:[%s0 + $0xb40] sm:$0xff]
  %v289 = vld [vmem:[%s0 + $0xb48] sm:$0xff]
  %v290 = vld [vmem:[%s0 + $0xb50] sm:$0xff]
  %v291 = vld [vmem:[%s0 + $0xb58] sm:$0xff]
  %v292 = vld [vmem:[%s0 + $0xb60] sm:$0xff]
  %v293 = vld [vmem:[%s0 + $0xb68] sm:$0xff]
  %v294 = vld [vmem:[%s0 + $0xb70] sm:$0xff]
  %v295 = vld [vmem:[%s0 + $0xb80] sm:$0xff]
  %v296 = vld [vmem:[%s0 + $0xb88] sm:$0xff]
  %v297 = vld [vmem:[%s0 + $0xb90] sm:$0xff]
  %v298 = vld [vmem:[%s0 + $0xb98] sm:$0xff]
  %v299 = vld [vmem:[%s0 + $0xba0] sm:$0xff]
  %v300 = vld [vmem:[%s0 + $0xba8] sm:$0xff]
  %v301 = vld [vmem:[%s0 + $0xbb0] sm:$0xff]
  %v302 = vld [vmem:[%s0 + $0xc00] sm:$0xff]
  %v303 = vld [vmem:[%s0 + $0xc08] sm:$0xff]
  %v304 = vld [vmem:[%s0 + $0xc10] sm:$0xff]
  %v305 = vld [vmem:[%s0 + $0xc18] sm:$0xff]
  %v306 = vld [vmem:[%s0 + $0xc20] sm:$0xff]
  %v307 = vld [vmem:[%s0 + $0xc28] sm:$0xff]
  %v308 = vld [vmem:[%s0 + $0xc30] sm:$0xff]
  %v309 = vld [vmem:[%s0 + $0xc40] sm:$0xff]
  %v310 = vld [vmem:[%s0 + $0xc48] sm:$0xff]
  %v311 = vld [vmem:[%s0 + $0xc50] sm:$0xff]
  %v312 = vld [vmem:[%s0 + $0xc58] sm:$0xff]
  %v313 = vld [vmem:[%s0 + $0xc60] sm:$0xff]
  %v314 = vld [vmem:[%s0 + $0xc68] sm:$0xff]
  %v315 = vld [vmem:[%s0 + $0xc70] sm:$0xff]
  %v316 = vld [vmem:[%s0 + $0xc80] sm:$0xff]
  %v317 = vld [vmem:[%s0 + $0xc88] sm:$0xff]
  %v318 = vld [vmem:[%s0 + $0xc90] sm:$0xff]
  %v319 = vld [vmem:[%s0 + $0xc98] sm:$0xff]
  %v320 = vld [vmem:[%s0 + $0xca0] sm:$0xff]
  %v321 = vld [vmem:[%s0 + $0xca8] sm:$0xff]
  %v322 = vld [vmem:[%s0 + $0xcb0] sm:$0xff]
  %v323 = vld [vmem:[%s0 + $0xcc0] sm:$0xff]
  %v324 = vld [vmem:[%s0 + $0xcc8] sm:$0xff]
  %v325 = vld [vmem:[%s0 + $0xcd0] sm:$0xff]
  %v326 = vld [vmem:[%s0 + $0xcd8] sm:$0xff]
  %v327 = vld [vmem:[%s0 + $0xce0] sm:$0xff]
  %v328 = vld [vmem:[%s0 + $0xce8] sm:$0xff]
  %v329 = vld [vmem:[%s0 + $0xcf0] sm:$0xff]
  %v330 = vld [vmem:[%s0 + $0xd00] sm:$0xff]
  %v331 = vld [vmem:[%s0 + $0xd08] sm:$0xff]
  %v332 = vld [vmem:[%s0 + $0xd10] sm:$0xff]
  %v333 = vld [vmem:[%s0 + $0xd18] sm:$0xff]
  %v334 = vld [vmem:[%s0 + $0xd20] sm:$0xff]
  %v335 = vld [vmem:[%s0 + $0xd28] sm:$0xff]
  %v336 = vld [vmem:[%s0 + $0xd30] sm:$0xff]
  %v337 = vld [vmem:[%s0 + $0xd40] sm:$0xff]
  %v338 = vld [vmem:[%s0 + $0xd48] sm:$0xff]
  %v339 = vld [vmem:[%s0 + $0xd50] sm:$0xff]
  %v340 = vld [vmem:[%s0 + $0xd58] sm:$0xff]
  %v341 = vld [vmem:[%s0 + $0xd60] sm:$0xff]
  %v342 = vld [vmem:[%s0 + $0xd68] sm:$0xff]
  %v343 = vld [vmem:[%s0 + $0xd70] sm:$0xff]
  %v344 = vld [vmem:[%s0 + $0xd80] sm:$0xff]
  %v345 = vld [vmem:[%s0 + $0xd88] sm:$0xff]
  %v346 = vld [vmem:[%s0 + $0xd90] sm:$0xff]
  %v347 = vld [vmem:[%s0 + $0xd98] sm:$0xff]
  %v348 = vld [vmem:[%s0 + $0xda0] sm:$0xff]
  %v349 = vld [vmem:[%s0 + $0xda8] sm:$0xff]
  %v350 = vld [vmem:[%s0 + $0xdb0] sm:$0xff]
  %v351 = vmax.f32 %v8, %v57
  %v352 = vmax.f32 %v9, %v58
  %v353 = vmax.f32 %v10, %v59
  %v354 = vmax.f32 %v11, %v60
  %v355 = vmax.f32 %v12, %v61
  %v356 = vmax.f32 %v13, %v62
  %v357 = vmax.f32 %v14, %v63
  %v358 = vmax.f32 %v15, %v64
  %v359 = vmax.f32 %v16, %v65
  %v360 = vmax.f32 %v17, %v66
  %v361 = vmax.f32 %v18, %v67
  %v362 = vmax.f32 %v19, %v68
  %v363 = vmax.f32 %v20, %v69
  %v364 = vmax.f32 %v21, %v70
  %v365 = vmax.f32 %v22, %v71
  %v366 = vmax.f32 %v23, %v72
  %v367 = vmax.f32 %v24, %v73
  %v368 = vmax.f32 %v25, %v74
  %v369 = vmax.f32 %v26, %v75
  %v370 = vmax.f32 %v27, %v76
  %v371 = vmax.f32 %v28, %v77
  %v372 = vmax.f32 %v29, %v78
  %v373 = vmax.f32 %v30, %v79
  %v374 = vmax.f32 %v31, %v80
  %v375 = vmax.f32 %v32, %v81
  %v376 = vmax.f32 %v33, %v82
  %v377 = vmax.f32 %v34, %v83
  %v378 = vmax.f32 %v35, %v84
  %v379 = vmax.f32 %v36, %v85
  %v380 = vmax.f32 %v37, %v86
  %v381 = vmax.f32 %v38, %v87
  %v382 = vmax.f32 %v39, %v88
  %v383 = vmax.f32 %v40, %v89
  %v384 = vmax.f32 %v41, %v90
  %v385 = vmax.f32 %v42, %v91
  %v386 = vmax.f32 %v43, %v92
  %v387 = vmax.f32 %v44, %v93
  %v388 = vmax.f32 %v45, %v94
  %v389 = vmax.f32 %v46, %v95
  %v390 = vmax.f32 %v47, %v96
  %v391 = vmax.f32 %v48, %v97
  %v392 = vmax.f32 %v49, %v98
  %v393 = vmax.f32 %v50, %v99
  %v394 = vmax.f32 %v51, %v100
  %v395 = vmax.f32 %v52, %v101
  %v396 = vmax.f32 %v53, %v102
  %v397 = vmax.f32 %v54, %v103
  %v398 = vmax.f32 %v55, %v104
  %v399 = vmax.f32 %v56, %v105
  %v400 = vmax.f32 %v106, %v155
  %v401 = vmax.f32 %v107, %v156
  %v402 = vmax.f32 %v108, %v157
  %v403 = vmax.f32 %v109, %v158
  %v404 = vmax.f32 %v110, %v159
  %v405 = vmax.f32 %v111, %v160
  %v406 = vmax.f32 %v112, %v161
  %v407 = vmax.f32 %v113, %v162
  %v408 = vmax.f32 %v114, %v163
  %v409 = vmax.f32 %v115, %v164
  %v410 = vmax.f32 %v116, %v165
  %v411 = vmax.f32 %v117, %v166
  %v412 = vmax.f32 %v118, %v167
  %v413 = vmax.f32 %v119, %v168
  %v414 = vmax.f32 %v120, %v169
  %v415 = vmax.f32 %v121, %v170
  %v416 = vmax.f32 %v122, %v171
  %v417 = vmax.f32 %v123, %v172
  %v418 = vmax.f32 %v124, %v173
  %v419 = vmax.f32 %v125, %v174
  %v420 = vmax.f32 %v126, %v175
  %v421 = vmax.f32 %v127, %v176
  %v422 = vmax.f32 %v128, %v177
  %v423 = vmax.f32 %v129, %v178
  %v424 = vmax.f32 %v130, %v179
  %v425 = vmax.f32 %v131, %v180
  %v426 = vmax.f32 %v132, %v181
  %v427 = vmax.f32 %v133, %v182
  %v428 = vmax.f32 %v134, %v183
  %v429 = vmax.f32 %v135, %v184
  %v430 = vmax.f32 %v136, %v185
  %v431 = vmax.f32 %v137, %v186
  %v432 = vmax.f32 %v138, %v187
  %v433 = vmax.f32 %v139, %v188
  %v434 = vmax.f32 %v140, %v189
  %v435 = vmax.f32 %v141, %v190
  %v436 = vmax.f32 %v142, %v191
  %v437 = vmax.f32 %v143, %v192
  %v438 = vmax.f32 %v144, %v193
  %v439 = vmax.f32 %v145, %v194
  %v440 = vmax.f32 %v146, %v195
  %v441 = vmax.f32 %v147, %v196
  %v442 = vmax.f32 %v148, %v197
  %v443 = vmax.f32 %v149, %v198
  %v444 = vmax.f32 %v150, %v199
  %v445 = vmax.f32 %v151, %v200
  %v446 = vmax.f32 %v152, %v201
  %v447 = vmax.f32 %v153, %v202
  %v448 = vmax.f32 %v154, %v203
  %v449 = vmax.f32 %v204, %v253
  %v450 = vmax.f32 %v205, %v254
  %v451 = vmax.f32 %v206, %v255
  %v452 = vmax.f32 %v207, %v256
  %v453 = vmax.f32 %v208, %v257
  %v454 = vmax.f32 %v209, %v258
  %v455 = vmax.f32 %v210, %v259
  %v456 = vmax.f32 %v211, %v260
  %v457 = vmax.f32 %v212, %v261
  %v458 = vmax.f32 %v213, %v262
  %v459 = vmax.f32 %v214, %v263
  %v460 = vmax.f32 %v215, %v264
  %v461 = vmax.f32 %v216, %v265
  %v462 = vmax.f32 %v217, %v266
  %v463 = vmax.f32 %v218, %v267
  %v464 = vmax.f32 %v219, %v268
  %v465 = vmax.f32 %v220, %v269
  %v466 = vmax.f32 %v221, %v270
  %v467 = vmax.f32 %v222, %v271
  %v468 = vmax.f32 %v223, %v272
  %v469 = vmax.f32 %v224, %v273
  %v470 = vmax.f32 %v225, %v274
  %v471 = vmax.f32 %v226, %v275
  %v472 = vmax.f32 %v227, %v276
  %v473 = vmax.f32 %v228, %v277
  %v474 = vmax.f32 %v229, %v278
  %v475 = vmax.f32 %v230, %v279
  %v476 = vmax.f32 %v231, %v280
  %v477 = vmax.f32 %v232, %v281
  %v478 = vmax.f32 %v233, %v282
  %v479 = vmax.f32 %v234, %v283
  %v480 = vmax.f32 %v235, %v284
  %v481 = vmax.f32 %v236, %v285
  %v482 = vmax.f32 %v237, %v286
  %v483 = vmax.f32 %v238, %v287
  %v484 = vmax.f32 %v239, %v288
  %v485 = vmax.f32 %v240, %v289
  %v486 = vmax.f32 %v241, %v290
  %v487 = vmax.f32 %v242, %v291
  %v488 = vmax.f32 %v243, %v292
  %v489 = vmax.f32 %v244, %v293
  %v490 = vmax.f32 %v245, %v294
  %v491 = vmax.f32 %v246, %v295
  %v492 = vmax.f32 %v247, %v296
  %v493 = vmax.f32 %v248, %v297
  %v494 = vmax.f32 %v249, %v298
  %v495 = vmax.f32 %v250, %v299
  %v496 = vmax.f32 %v251, %v300
  %v497 = vmax.f32 %v252, %v301
  %v498 = vmax.f32 %v351, %v106
  %v499 = vmax.f32 %v352, %v107
  %v500 = vmax.f32 %v353, %v108
  %v501 = vmax.f32 %v354, %v109
  %v502 = vmax.f32 %v355, %v110
  %v503 = vmax.f32 %v356, %v111
  %v504 = vmax.f32 %v357, %v112
  %v505 = vmax.f32 %v358, %v113
  %v506 = vmax.f32 %v359, %v114
  %v507 = vmax.f32 %v360, %v115
  %v508 = vmax.f32 %v361, %v116
  %v509 = vmax.f32 %v362, %v117
  %v510 = vmax.f32 %v363, %v118
  %v511 = vmax.f32 %v364, %v119
  %v512 = vmax.f32 %v365, %v120
  %v513 = vmax.f32 %v366, %v121
  %v514 = vmax.f32 %v367, %v122
  %v515 = vmax.f32 %v368, %v123
  %v516 = vmax.f32 %v369, %v124
  %v517 = vmax.f32 %v370, %v125
  %v518 = vmax.f32 %v371, %v126
  %v519 = vmax.f32 %v372, %v127
  %v520 = vmax.f32 %v373, %v128
  %v521 = vmax.f32 %v374, %v129
  %v522 = vmax.f32 %v375, %v130
  %v523 = vmax.f32 %v376, %v131
  %v524 = vmax.f32 %v377, %v132
  %v525 = vmax.f32 %v378, %v133
  %v526 = vmax.f32 %v379, %v134
  %v527 = vmax.f32 %v380, %v135
  %v528 = vmax.f32 %v381, %v136
  %v529 = vmax.f32 %v382, %v137
  %v530 = vmax.f32 %v383, %v138
  %v531 = vmax.f32 %v384, %v139
  %v532 = vmax.f32 %v385, %v140
  %v533 = vmax.f32 %v386, %v141
  %v534 = vmax.f32 %v387, %v142
  %v535 = vmax.f32 %v388, %v143
  %v536 = vmax.f32 %v389, %v144
  %v537 = vmax.f32 %v390, %v145
  %v538 = vmax.f32 %v391, %v146
  %v539 = vmax.f32 %v392, %v147
  %v540 = vmax.f32 %v393, %v148
  %v541 = vmax.f32 %v394, %v149
  %v542 = vmax.f32 %v395, %v150
  %v543 = vmax.f32 %v396, %v151
  %v544 = vmax.f32 %v397, %v152
  %v545 = vmax.f32 %v398, %v153
  %v546 = vmax.f32 %v399, %v154
  %v547 = vmax.f32 %v400, %v204
  %v548 = vmax.f32 %v401, %v205
  %v549 = vmax.f32 %v402, %v206
  %v550 = vmax.f32 %v403, %v207
  %v551 = vmax.f32 %v404, %v208
  %v552 = vmax.f32 %v405, %v209
  %v553 = vmax.f32 %v406, %v210
  %v554 = vmax.f32 %v407, %v211
  %v555 = vmax.f32 %v408, %v212
  %v556 = vmax.f32 %v409, %v213
  %v557 = vmax.f32 %v410, %v214
  %v558 = vmax.f32 %v411, %v215
  %v559 = vmax.f32 %v412, %v216
  %v560 = vmax.f32 %v413, %v217
  %v561 = vmax.f32 %v414, %v218
  %v562 = vmax.f32 %v415, %v219
  %v563 = vmax.f32 %v416, %v220
  %v564 = vmax.f32 %v417, %v221
  %v565 = vmax.f32 %v418, %v222
  %v566 = vmax.f32 %v419, %v223
  %v567 = vmax.f32 %v420, %v224
  %v568 = vmax.f32 %v421, %v225
  %v569 = vmax.f32 %v422, %v226
  %v570 = vmax.f32 %v423, %v227
  %v571 = vmax.f32 %v424, %v228
  %v572 = vmax.f32 %v425, %v229
  %v573 = vmax.f32 %v426, %v230
  %v574 = vmax.f32 %v427, %v231
  %v575 = vmax.f32 %v428, %v232
  %v576 = vmax.f32 %v429, %v233
  %v577 = vmax.f32 %v430, %v234
  %v578 = vmax.f32 %v431, %v235
  %v579 = vmax.f32 %v432, %v236
  %v580 = vmax.f32 %v433, %v237
  %v581 = vmax.f32 %v434, %v238
  %v582 = vmax.f32 %v435, %v239
  %v583 = vmax.f32 %v436, %v240
  %v584 = vmax.f32 %v437, %v241
  %v585 = vmax.f32 %v438, %v242
  %v586 = vmax.f32 %v439, %v243
  %v587 = vmax.f32 %v440, %v244
  %v588 = vmax.f32 %v441, %v245
  %v589 = vmax.f32 %v442, %v246
  %v590 = vmax.f32 %v443, %v247
  %v591 = vmax.f32 %v444, %v248
  %v592 = vmax.f32 %v445, %v249
  %v593 = vmax.f32 %v446, %v250
  %v594 = vmax.f32 %v447, %v251
  %v595 = vmax.f32 %v448, %v252
  %v596 = vmax.f32 %v449, %v302
  %v597 = vmax.f32 %v450, %v303
  %v598 = vmax.f32 %v451, %v304
  %v599 = vmax.f32 %v452, %v305
  %v600 = vmax.f32 %v453, %v306
  %v601 = vmax.f32 %v454, %v307
  %v602 = vmax.f32 %v455, %v308
  %v603 = vmax.f32 %v456, %v309
  %v604 = vmax.f32 %v457, %v310
  %v605 = vmax.f32 %v458, %v311
  %v606 = vmax.f32 %v459, %v312
  %v607 = vmax.f32 %v460, %v313
  %v608 = vmax.f32 %v461, %v314
  %v609 = vmax.f32 %v462, %v315
  %v610 = vmax.f32 %v463, %v316
  %v611 = vmax.f32 %v464, %v317
  %v612 = vmax.f32 %v465, %v318
  %v613 = vmax.f32 %v466, %v319
  %v614 = vmax.f32 %v467, %v320
  %v615 = vmax.f32 %v468, %v321
  %v616 = vmax.f32 %v469, %v322
  %v617 = vmax.f32 %v470, %v323
  %v618 = vmax.f32 %v471, %v324
  %v619 = vmax.f32 %v472, %v325
  %v620 = vmax.f32 %v473, %v326
  %v621 = vmax.f32 %v474, %v327
  %v622 = vmax.f32 %v475, %v328
  %v623 = vmax.f32 %v476, %v329
  %v624 = vmax.f32 %v477, %v330
  %v625 = vmax.f32 %v478, %v331
  %v626 = vmax.f32 %v479, %v332
  %v627 = vmax.f32 %v480, %v333
  %v628 = vmax.f32 %v481, %v334
  %v629 = vmax.f32 %v482, %v335
  %v630 = vmax.f32 %v483, %v336
  %v631 = vmax.f32 %v484, %v337
  %v632 = vmax.f32 %v485, %v338
  %v633 = vmax.f32 %v486, %v339
  %v634 = vmax.f32 %v487, %v340
  %v635 = vmax.f32 %v488, %v341
  %v636 = vmax.f32 %v489, %v342
  %v637 = vmax.f32 %v490, %v343
  %v638 = vmax.f32 %v491, %v344
  %v639 = vmax.f32 %v492, %v345
  %v640 = vmax.f32 %v493, %v346
  %v641 = vmax.f32 %v494, %v347
  %v642 = vmax.f32 %v495, %v348
  %v643 = vmax.f32 %v496, %v349
  %v644 = vmax.f32 %v497, %v350
  %v645 = vmax.f32 %v498, %v505
  %v646 = vmax.f32 %v499, %v506
  %v647 = vmax.f32 %v500, %v507
  %v648 = vmax.f32 %v501, %v508
  %v649 = vmax.f32 %v502, %v509
  %v650 = vmax.f32 %v503, %v510
  %v651 = vmax.f32 %v504, %v511
  %v652 = vmax.f32 %v512, %v519
  %v653 = vmax.f32 %v513, %v520
  %v654 = vmax.f32 %v514, %v521
  %v655 = vmax.f32 %v515, %v522
  %v656 = vmax.f32 %v516, %v523
  %v657 = vmax.f32 %v517, %v524
  %v658 = vmax.f32 %v518, %v525
  %v659 = vmax.f32 %v526, %v533
  %v660 = vmax.f32 %v527, %v534
  %v661 = vmax.f32 %v528, %v535
  %v662 = vmax.f32 %v529, %v536
  %v663 = vmax.f32 %v530, %v537
  %v664 = vmax.f32 %v531, %v538
  %v665 = vmax.f32 %v532, %v539
  %v666 = vmax.f32 %v547, %v554
  %v667 = vmax.f32 %v548, %v555
  %v668 = vmax.f32 %v549, %v556
  %v669 = vmax.f32 %v550, %v557
  %v670 = vmax.f32 %v551, %v558
  %v671 = vmax.f32 %v552, %v559
  %v672 = vmax.f32 %v553, %v560
  %v673 = vmax.f32 %v561, %v568
  %v674 = vmax.f32 %v562, %v569
  %v675 = vmax.f32 %v563, %v570
  %v676 = vmax.f32 %v564, %v571
  %v677 = vmax.f32 %v565, %v572
  %v678 = vmax.f32 %v566, %v573
  %v679 = vmax.f32 %v567, %v574
  %v680 = vmax.f32 %v575, %v582
  %v681 = vmax.f32 %v576, %v583
  %v682 = vmax.f32 %v577, %v584
  %v683 = vmax.f32 %v578, %v585
  %v684 = vmax.f32 %v579, %v586
  %v685 = vmax.f32 %v580, %v587
  %v686 = vmax.f32 %v581, %v588
  %v687 = vmax.f32 %v596, %v603
  %v688 = vmax.f32 %v597, %v604
  %v689 = vmax.f32 %v598, %v605
  %v690 = vmax.f32 %v599, %v606
  %v691 = vmax.f32 %v600, %v607
  %v692 = vmax.f32 %v601, %v608
  %v693 = vmax.f32 %v602, %v609
  %v694 = vmax.f32 %v610, %v617
  %v695 = vmax.f32 %v611, %v618
  %v696 = vmax.f32 %v612, %v619
  %v697 = vmax.f32 %v613, %v620
  %v698 = vmax.f32 %v614, %v621
  %v699 = vmax.f32 %v615, %v622
  %v700 = vmax.f32 %v616, %v623
  %v701 = vmax.f32 %v624, %v631
  %v702 = vmax.f32 %v625, %v632
  %v703 = vmax.f32 %v626, %v633
  %v704 = vmax.f32 %v627, %v634
  %v705 = vmax.f32 %v628, %v635
  %v706 = vmax.f32 %v629, %v636
  %v707 = vmax.f32 %v630, %v637
  %v708 = vmax.f32 %v645, %v512
  %v709 = vmax.f32 %v646, %v513
  %v710 = vmax.f32 %v647, %v514
  %v711 = vmax.f32 %v648, %v515
  %v712 = vmax.f32 %v649, %v516
  %v713 = vmax.f32 %v650, %v517
  %v714 = vmax.f32 %v651, %v518
  %v715 = vmax.f32 %v652, %v526
  %v716 = vmax.f32 %v653, %v527
  %v717 = vmax.f32 %v654, %v528
  %v718 = vmax.f32 %v655, %v529
  %v719 = vmax.f32 %v656, %v530
  %v720 = vmax.f32 %v657, %v531
  %v721 = vmax.f32 %v658, %v532
  %v722 = vmax.f32 %v659, %v540
  %v723 = vmax.f32 %v660, %v541
  %v724 = vmax.f32 %v661, %v542
  %v725 = vmax.f32 %v662, %v543
  %v726 = vmax.f32 %v663, %v544
  %v727 = vmax.f32 %v664, %v545
  %v728 = vmax.f32 %v665, %v546
  %v729 = vmax.f32 %v666, %v561
  %v730 = vmax.f32 %v667, %v562
  %v731 = vmax.f32 %v668, %v563
  %v732 = vmax.f32 %v669, %v564
  %v733 = vmax.f32 %v670, %v565
  %v734 = vmax.f32 %v671, %v566
  %v735 = vmax.f32 %v672, %v567
  %v736 = vmax.f32 %v673, %v575
  %v737 = vmax.f32 %v674, %v576
  %v738 = vmax.f32 %v675, %v577
  %v739 = vmax.f32 %v676, %v578
  %v740 = vmax.f32 %v677, %v579
  %v741 = vmax.f32 %v678, %v580
  %v742 = vmax.f32 %v679, %v581
  %v743 = vmax.f32 %v680, %v589
  %v744 = vmax.f32 %v681, %v590
  %v745 = vmax.f32 %v682, %v591
  %v746 = vmax.f32 %v683, %v592
  %v747 = vmax.f32 %v684, %v593
  %v748 = vmax.f32 %v685, %v594
  %v749 = vmax.f32 %v686, %v595
  %v750 = vmax.f32 %v687, %v610
  %v751 = vmax.f32 %v688, %v611
  %v752 = vmax.f32 %v689, %v612
  %v753 = vmax.f32 %v690, %v613
  %v754 = vmax.f32 %v691, %v614
  %v755 = vmax.f32 %v692, %v615
  %v756 = vmax.f32 %v693, %v616
  %v757 = vmax.f32 %v694, %v624
  %v758 = vmax.f32 %v695, %v625
  %v759 = vmax.f32 %v696, %v626
  %v760 = vmax.f32 %v697, %v627
  %v761 = vmax.f32 %v698, %v628
  %v762 = vmax.f32 %v699, %v629
  %v763 = vmax.f32 %v700, %v630
  %v764 = vmax.f32 %v701, %v638
  %v765 = vmax.f32 %v702, %v639
  %v766 = vmax.f32 %v703, %v640
  %v767 = vmax.f32 %v704, %v641
  %v768 = vmax.f32 %v705, %v642
  %v769 = vmax.f32 %v706, %v643
  %v770 = vmax.f32 %v707, %v644
  %v771 = vmax.f32 %v708, %v709
  %v772 = vmax.f32 %v710, %v711
  %v773 = vmax.f32 %v712, %v713
  %v774 = vmax.f32 %v715, %v716
  %v775 = vmax.f32 %v717, %v718
  %v776 = vmax.f32 %v719, %v720
  %v777 = vmax.f32 %v722, %v723
  %v778 = vmax.f32 %v724, %v725
  %v779 = vmax.f32 %v726, %v727
  %v780 = vmax.f32 %v729, %v730
  %v781 = vmax.f32 %v731, %v732
  %v782 = vmax.f32 %v733, %v734
  %v783 = vmax.f32 %v736, %v737
  %v784 = vmax.f32 %v738, %v739
  %v785 = vmax.f32 %v740, %v741
  %v786 = vmax.f32 %v743, %v744
  %v787 = vmax.f32 %v745, %v746
  %v788 = vmax.f32 %v747, %v748
  %v789 = vmax.f32 %v750, %v751
  %v790 = vmax.f32 %v752, %v753
  %v791 = vmax.f32 %v754, %v755
  %v792 = vmax.f32 %v757, %v758
  %v793 = vmax.f32 %v759, %v760
  %v794 = vmax.f32 %v761, %v762
  %v795 = vmax.f32 %v764, %v765
  %v796 = vmax.f32 %v766, %v767
  %v797 = vmax.f32 %v768, %v769
  %v798 = vmax.f32 %v771, %v710
  %v799 = vmax.f32 %v772, %v712
  %v800 = vmax.f32 %v773, %v714
  %v801 = vmax.f32 %v774, %v717
  %v802 = vmax.f32 %v775, %v719
  %v803 = vmax.f32 %v776, %v721
  %v804 = vmax.f32 %v777, %v724
  %v805 = vmax.f32 %v778, %v726
  %v806 = vmax.f32 %v779, %v728
  %v807 = vmax.f32 %v780, %v731
  %v808 = vmax.f32 %v781, %v733
  %v809 = vmax.f32 %v782, %v735
  %v810 = vmax.f32 %v783, %v738
  %v811 = vmax.f32 %v784, %v740
  %v812 = vmax.f32 %v785, %v742
  %v813 = vmax.f32 %v786, %v745
  %v814 = vmax.f32 %v787, %v747
  %v815 = vmax.f32 %v788, %v749
  %v816 = vmax.f32 %v789, %v752
  %v817 = vmax.f32 %v790, %v754
  %v818 = vmax.f32 %v791, %v756
  %v819 = vmax.f32 %v792, %v759
  %v820 = vmax.f32 %v793, %v761
  %v821 = vmax.f32 %v794, %v763
  %v822 = vmax.f32 %v795, %v766
  %v823 = vmax.f32 %v796, %v768
  %v824 = vmax.f32 %v797, %v770
  %v852 = vrot.slane %v798, 1
  %v853 = vrot.slane %v799, 1
  %v854 = vrot.slane %v800, 1
  %v855 = vrot.slane %v801, 1
  %v856 = vrot.slane %v802, 1
  %v857 = vrot.slane %v803, 1
  %v858 = vrot.slane %v804, 1
  %v859 = vrot.slane %v805, 1
  %v860 = vrot.slane %v806, 1
  %v861 = vrot.slane %v807, 1
  %v862 = vrot.slane %v808, 1
  %v863 = vrot.slane %v809, 1
  %v864 = vrot.slane %v810, 1
  %v865 = vrot.slane %v811, 1
  %v866 = vrot.slane %v812, 1
  %v867 = vrot.slane %v813, 1
  %v868 = vrot.slane %v814, 1
  %v869 = vrot.slane %v815, 1
  %v870 = vrot.slane %v816, 1
  %v871 = vrot.slane %v817, 1
  %v872 = vrot.slane %v818, 1
  %v873 = vrot.slane %v819, 1
  %v874 = vrot.slane %v820, 1
  %v875 = vrot.slane %v821, 1
  %v876 = vrot.slane %v822, 1
  %v877 = vrot.slane %v823, 1
  %v878 = vrot.slane %v824, 1
  %v906 = vmax.f32 %v798, %v852
  %v907 = vmax.f32 %v799, %v853
  %v908 = vmax.f32 %v800, %v854
  %v909 = vmax.f32 %v801, %v855
  %v910 = vmax.f32 %v802, %v856
  %v911 = vmax.f32 %v803, %v857
  %v912 = vmax.f32 %v804, %v858
  %v913 = vmax.f32 %v805, %v859
  %v914 = vmax.f32 %v806, %v860
  %v915 = vmax.f32 %v807, %v861
  %v916 = vmax.f32 %v808, %v862
  %v917 = vmax.f32 %v809, %v863
  %v918 = vmax.f32 %v810, %v864
  %v919 = vmax.f32 %v811, %v865
  %v920 = vmax.f32 %v812, %v866
  %v921 = vmax.f32 %v813, %v867
  %v922 = vmax.f32 %v814, %v868
  %v923 = vmax.f32 %v815, %v869
  %v924 = vmax.f32 %v816, %v870
  %v925 = vmax.f32 %v817, %v871
  %v926 = vmax.f32 %v818, %v872
  %v927 = vmax.f32 %v819, %v873
  %v928 = vmax.f32 %v820, %v874
  %v929 = vmax.f32 %v821, %v875
  %v930 = vmax.f32 %v822, %v876
  %v931 = vmax.f32 %v823, %v877
  %v932 = vmax.f32 %v824, %v878
  %v933 = vrot.slane %v798, 2
  %v934 = vrot.slane %v799, 2
  %v935 = vrot.slane %v800, 2
  %v936 = vrot.slane %v801, 2
  %v937 = vrot.slane %v802, 2
  %v938 = vrot.slane %v803, 2
  %v939 = vrot.slane %v804, 2
  %v940 = vrot.slane %v805, 2
  %v941 = vrot.slane %v806, 2
  %v942 = vrot.slane %v807, 2
  %v943 = vrot.slane %v808, 2
  %v944 = vrot.slane %v809, 2
  %v945 = vrot.slane %v810, 2
  %v946 = vrot.slane %v811, 2
  %v947 = vrot.slane %v812, 2
  %v948 = vrot.slane %v813, 2
  %v949 = vrot.slane %v814, 2
  %v950 = vrot.slane %v815, 2
  %v951 = vrot.slane %v816, 2
  %v952 = vrot.slane %v817, 2
  %v953 = vrot.slane %v818, 2
  %v954 = vrot.slane %v819, 2
  %v955 = vrot.slane %v820, 2
  %v956 = vrot.slane %v821, 2
  %v957 = vrot.slane %v822, 2
  %v958 = vrot.slane %v823, 2
  %v959 = vrot.slane %v824, 2
  %v987 = vmax.f32 %v906, %v933
  %v988 = vmax.f32 %v907, %v934
  %v989 = vmax.f32 %v908, %v935
  %v990 = vmax.f32 %v909, %v936
  %v991 = vmax.f32 %v910, %v937
  %v992 = vmax.f32 %v911, %v938
  %v993 = vmax.f32 %v912, %v939
  %v994 = vmax.f32 %v913, %v940
  %v995 = vmax.f32 %v914, %v941
  %v996 = vmax.f32 %v915, %v942
  %v997 = vmax.f32 %v916, %v943
  %v998 = vmax.f32 %v917, %v944
  %v999 = vmax.f32 %v918, %v945
  %v1000 = vmax.f32 %v919, %v946
  %v1001 = vmax.f32 %v920, %v947
  %v1002 = vmax.f32 %v921, %v948
  %v1003 = vmax.f32 %v922, %v949
  %v1004 = vmax.f32 %v923, %v950
  %v1005 = vmax.f32 %v924, %v951
  %v1006 = vmax.f32 %v925, %v952
  %v1007 = vmax.f32 %v926, %v953
  %v1008 = vmax.f32 %v927, %v954
  %v1009 = vmax.f32 %v928, %v955
  %v1010 = vmax.f32 %v929, %v956
  %v1011 = vmax.f32 %v930, %v957
  %v1012 = vmax.f32 %v931, %v958
  %v1013 = vmax.f32 %v932, %v959
  %1014 = vst [vmem:[%s1] sm:$0x1] %v987
  %1015 = vst [vmem:[%s1 + $0x4] sm:$0x1] %v988
  %1016 = vst [vmem:[%s1 + $0x8] sm:$0x1] %v989
  %1017 = vst [vmem:[%s1 + $0xc] sm:$0x1] %v990
  %1018 = vst [vmem:[%s1 + $0x10] sm:$0x1] %v991
  %1019 = vst [vmem:[%s1 + $0x14] sm:$0x1] %v992
  %1020 = vst [vmem:[%s1 + $0x18] sm:$0x1] %v993
  %1021 = vst [vmem:[%s1 + $0x1c] sm:$0x1] %v994
  %1022 = vst [vmem:[%s1 + $0x20] sm:$0x1] %v995
  %1023 = vst [vmem:[%s1 + $0x24] sm:$0x1] %v996
  %1024 = vst [vmem:[%s1 + $0x28] sm:$0x1] %v997
  %1025 = vst [vmem:[%s1 + $0x2c] sm:$0x1] %v998
  %1026 = vst [vmem:[%s1 + $0x30] sm:$0x1] %v999
  %1027 = vst [vmem:[%s1 + $0x34] sm:$0x1] %v1000
  %1028 = vst [vmem:[%s1 + $0x38] sm:$0x1] %v1001
  %1029 = vst [vmem:[%s1 + $0x3c] sm:$0x1] %v1002
  %1030 = vst [vmem:[%s1 + $0x40] sm:$0x1] %v1003
  %1031 = vst [vmem:[%s1 + $0x44] sm:$0x1] %v1004
  %1032 = vst [vmem:[%s1 + $0x48] sm:$0x1] %v1005
  %1033 = vst [vmem:[%s1 + $0x4c] sm:$0x1] %v1006
  %1034 = vst [vmem:[%s1 + $0x50] sm:$0x1] %v1007
  %1035 = vst [vmem:[%s1 + $0x54] sm:$0x1] %v1008
  %1036 = vst [vmem:[%s1 + $0x58] sm:$0x1] %v1009
  %1037 = vst [vmem:[%s1 + $0x5c] sm:$0x1] %v1010
  %1038 = vst [vmem:[%s1 + $0x60] sm:$0x1] %v1011
  %1039 = vst [vmem:[%s1 + $0x64] sm:$0x1] %v1012
  %1040 = vst [vmem:[%s1 + $0x68] sm:$0x1] %v1013
  %1041 = vst [vmem:[%s1 - $0x1] sm:$0x4] %v987
  %1042 = vst [vmem:[%s1 + $0x3] sm:$0x4] %v988
  %1043 = vst [vmem:[%s1 + $0x7] sm:$0x4] %v989
  %1044 = vst [vmem:[%s1 + $0xb] sm:$0x4] %v990
  %1045 = vst [vmem:[%s1 + $0xf] sm:$0x4] %v991
  %1046 = vst [vmem:[%s1 + $0x13] sm:$0x4] %v992
  %1047 = vst [vmem:[%s1 + $0x17] sm:$0x4] %v993
  %1048 = vst [vmem:[%s1 + $0x1b] sm:$0x4] %v994
  %1049 = vst [vmem:[%s1 + $0x1f] sm:$0x4] %v995
  %1050 = vst [vmem:[%s1 + $0x23] sm:$0x4] %v996
  %1051 = vst [vmem:[%s1 + $0x27] sm:$0x4] %v997
  %1052 = vst [vmem:[%s1 + $0x2b] sm:$0x4] %v998
  %1053 = vst [vmem:[%s1 + $0x2f] sm:$0x4] %v999
  %1054 = vst [vmem:[%s1 + $0x33] sm:$0x4] %v1000
  %1055 = vst [vmem:[%s1 + $0x37] sm:$0x4] %v1001
  %1056 = vst [vmem:[%s1 + $0x3b] sm:$0x4] %v1002
  %1057 = vst [vmem:[%s1 + $0x3f] sm:$0x4] %v1003
  %1058 = vst [vmem:[%s1 + $0x43] sm:$0x4] %v1004
  %1059 = vst [vmem:[%s1 + $0x47] sm:$0x4] %v1005
  %1060 = vst [vmem:[%s1 + $0x4b] sm:$0x4] %v1006
  %1061 = vst [vmem:[%s1 + $0x4f] sm:$0x4] %v1007
  %1062 = vst [vmem:[%s1 + $0x53] sm:$0x4] %v1008
  %1063 = vst [vmem:[%s1 + $0x57] sm:$0x4] %v1009
  %1064 = vst [vmem:[%s1 + $0x5b] sm:$0x4] %v1010
  %1065 = vst [vmem:[%s1 + $0x5f] sm:$0x4] %v1011
  %1066 = vst [vmem:[%s1 + $0x63] sm:$0x4] %v1012
  %1067 = vst [vmem:[%s1 + $0x67] sm:$0x4] %v1013
  %1068 = vst [vmem:[%s1 - $0x2] sm:$0x10] %v987
  %1069 = vst [vmem:[%s1 + $0x2] sm:$0x10] %v988
  %1070 = vst [vmem:[%s1 + $0x6] sm:$0x10] %v989
  %1071 = vst [vmem:[%s1 + $0xa] sm:$0x10] %v990
  %1072 = vst [vmem:[%s1 + $0xe] sm:$0x10] %v991
  %1073 = vst [vmem:[%s1 + $0x12] sm:$0x10] %v992
  %1074 = vst [vmem:[%s1 + $0x16] sm:$0x10] %v993
  %1075 = vst [vmem:[%s1 + $0x1a] sm:$0x10] %v994
  %1076 = vst [vmem:[%s1 + $0x1e] sm:$0x10] %v995
  %1077 = vst [vmem:[%s1 + $0x22] sm:$0x10] %v996
  %1078 = vst [vmem:[%s1 + $0x26] sm:$0x10] %v997
  %1079 = vst [vmem:[%s1 + $0x2a] sm:$0x10] %v998
  %1080 = vst [vmem:[%s1 + $0x2e] sm:$0x10] %v999
  %1081 = vst [vmem:[%s1 + $0x32] sm:$0x10] %v1000
  %1082 = vst [vmem:[%s1 + $0x36] sm:$0x10] %v1001
  %1083 = vst [vmem:[%s1 + $0x3a] sm:$0x10] %v1002
  %1084 = vst [vmem:[%s1 + $0x3e] sm:$0x10] %v1003
  %1085 = vst [vmem:[%s1 + $0x42] sm:$0x10] %v1004
  %1086 = vst [vmem:[%s1 + $0x46] sm:$0x10] %v1005
  %1087 = vst [vmem:[%s1 + $0x4a] sm:$0x10] %v1006
  %1088 = vst [vmem:[%s1 + $0x4e] sm:$0x10] %v1007
  %1089 = vst [vmem:[%s1 + $0x52] sm:$0x10] %v1008
  %1090 = vst [vmem:[%s1 + $0x56] sm:$0x10] %v1009
  %1091 = vst [vmem:[%s1 + $0x5a] sm:$0x10] %v1010
  %1092 = vst [vmem:[%s1 + $0x5e] sm:$0x10] %v1011
  %1093 = vst [vmem:[%s1 + $0x62] sm:$0x10] %v1012
  %1094 = vst [vmem:[%s1 + $0x66] sm:$0x10] %v1013
  // Predicated region
  $region6: #{_max_pool4d.1} parent=0 // pred_check
    _
  $region7: #{_max_pool4d.1} parent=0 // pred_check_branch
    %1096 = sbr.rel (0) target = $region9
  $region8: #{_max_pool4d.1} parent=0 // pred_region
    _
  $region9: #{_max_pool4d.1} parent=0 // pred_fallthru
    _
  // Predicated region
  $region10: #{_max_pool4d.1} parent=0 // pred_check
    _
  $region11: #{_max_pool4d.1} parent=0 // pred_check_branch
    %1098 = sbr.rel (0) target = $region13
  $region12: #{_max_pool4d.1} parent=0 // pred_region
    _
  $region13: #{_max_pool4d.1} parent=0 // pred_fallthru
    _

</llo_original>
